<compile_context>
chip_gen: v7x
topology: tpu7x:2x2x1
jax: 0.10.0
libtpu: 0.0.40
codegen_flags: <defaults>
</compile_context>

<pallas_src>
import jax
import jax.numpy as jnp
from jax.experimental import pallas as pl
from jax.experimental.pallas import tpu as pltpu


def _conv1x1_kernel(x_ref, w_ref, b_ref, o_ref):
    # x_ref: (b_blk, Cin, ts)  w_ref: (Cout, Cin)  b_ref: (Cout, 1)
    # o_ref: (b_blk, Cout, ts)
    b_blk, cin, _ = x_ref.shape
    w = w_ref[...].astype(jnp.float32)      # (Cout, Cin) -- tiny, stays resident
    bias = b_ref[...].astype(jnp.float32)   # (Cout, 1)

    for b in range(b_blk):                  # static unroll (b_blk <= 8)
        x = x_ref[b].astype(jnp.float32)    # (Cin, ts)
        # Unrolled exact-f32 VPU broadcast-FMA over the 5 input channels.
        acc = bias + w[:, 0:1] * x[0:1, :]  # (Cout, ts)
        for c in range(1, cin):
            acc = acc + w[:, c:c + 1] * x[c:c + 1, :]
        o_ref[b] = acc.astype(o_ref.dtype)


def _pick_spatial_tile(hw, max_lanes):
    """Lane tile: divides HW (or equals it) whenever possible -> no pad, no slice."""
    if hw <= max_lanes:
        return hw                              # full-extent block is always legal
    cap = (max_lanes // 128) * 128
    for t in range(cap, 0, -128):
        if hw % t == 0:
            return t                           # exact divisor -> no masked tail
    return cap                                 # single ragged tail; Pallas masks OOB writes


def temporal_encoding_forward(x_nchw, weight, bias, *,
                              max_spatial_lanes=32768, out_dtype=None):
    """1x1 conv with bias: x (B, Cin, H, W), weight (Cout, Cin, 1, 1), bias (Cout,).

    Returns (B, Cout, H, W), matching nn.Conv2d(Cin, Cout, kernel_size=(1,1))."""
    B, Cin, H, W = x_nchw.shape
    Cout = weight.shape[0]
    HW = H * W
    out_dtype = out_dtype or x_nchw.dtype      # pass jnp.bfloat16 here if the consumer allows

    # View-only flatten of the spatial dims; no pads, no transposes, no copies.
    x_flat = x_nchw.reshape(B, Cin, HW)
    w_mat = weight.reshape(Cout, Cin)
    b_col = bias.reshape(Cout, 1)

    ts = _pick_spatial_tile(HW, max_spatial_lanes)
    n_sp = pl.cdiv(HW, ts)

    # Batch-pack small spatial shapes: when HW fits in one tile, put several batch
    # rows in each grid step so per-step traffic amortizes the ~0.35us step cost.
    b_blk = 1
    if n_sp == 1:
        cap = max(1, min(8, max_spatial_lanes // max(ts, 1)))
        for d in range(min(B, cap), 0, -1):
            if B % d == 0:
                b_blk = d
                break
    n_b = B // b_blk

    out_flat = pl.pallas_call(
        _conv1x1_kernel,
        out_shape=jax.ShapeDtypeStruct((B, Cout, HW), out_dtype),
        grid_spec=pltpu.PrefetchScalarGridSpec(
            num_scalar_prefetch=0,
            grid=(n_b, n_sp),
            in_specs=[
                pl.BlockSpec((b_blk, Cin, ts), lambda b, j: (b, 0, j)),
                pl.BlockSpec((Cout, Cin), lambda b, j: (0, 0)),   # tiny, constant block
                pl.BlockSpec((Cout, 1), lambda b, j: (0, 0)),     # bias, constant block
            ],
            out_specs=pl.BlockSpec((b_blk, Cout, ts), lambda b, j: (b, 0, j)),
        ),
        compiler_params=pltpu.CompilerParams(
            dimension_semantics=("parallel", "parallel"),
            # ~14 MiB worst case at ts=32768 (double-buffered in+out + f32 acc temp);
            # 32 MiB fits v5e/v6e (128 MiB) and v7x (64 MiB physical) with headroom.
            vmem_limit_bytes=32 * 1024 * 1024,
        ),
    )(x_flat, w_mat, b_col)

    return out_flat.reshape(B, Cout, H, W)


if __name__ == "__main__":
    d_model = 32
    B, Cin, H, W = 2, 5, 16, 16

    key = jax.random.PRNGKey(0)
    kx, kw, kb = jax.random.split(key, 3)

    # Deterministic synthetic params (shapes follow nn.Conv2d(5, d_model, (1,1), bias=True)).
    x = jax.random.normal(kx, (B, Cin, H, W), dtype=jnp.float32)
    weight = jax.random.normal(kw, (d_model, Cin, 1, 1), dtype=jnp.float32) * 0.1
    bias = jax.random.normal(kb, (d_model,), dtype=jnp.float32) * 0.1

    out = temporal_encoding_forward(x, weight, bias)
    out = jax.block_until_ready(out)

    # Reference check in plain JAX (same math): 1x1 conv == per-pixel channel matmul.
    ref = jnp.einsum("bchw,oc->bohw", x, weight.reshape(d_model, Cin),
                     precision=jax.lax.Precision.HIGHEST) + bias[None, :, None, None]
    assert out.shape == (B, d_model, H, W)
    assert jnp.allclose(out, ref, atol=1e-4, rtol=1e-4)

    print("KERNEL_OK")
</pallas_src>

<mosaic_0001>
module attributes {stable_mosaic.version = 11 : i64} {
  func.func @_conv1x1_kernel(%arg0: i32, %arg1: i32, %arg2: memref<2x5x256xf32, #tpu.memory_space<vmem>>, %arg3: memref<32x5xf32, #tpu.memory_space<vmem>>, %arg4: memref<32x1xf32, #tpu.memory_space<vmem>>, %arg5: memref<2x32x256xf32, #tpu.memory_space<vmem>>) attributes {dimension_semantics = [#tpu.dimension_semantics<parallel>, #tpu.dimension_semantics<parallel>], iteration_bounds = array<i64: 1, 1>, scalar_prefetch = 0 : i64, scratch_operands = 0 : i64, tpu.core_type = #tpu.core_type<tc>, window_params = [{transform_indices = @transform_0, window_bounds = array<i64: 2, 5, 256>}, {pipeline_mode = #tpu.pipeline_mode<synchronous>, transform_indices = @transform_1, window_bounds = array<i64: 32, 5>}, {pipeline_mode = #tpu.pipeline_mode<synchronous>, transform_indices = @transform_2, window_bounds = array<i64: 32, 1>}, {transform_indices = @transform_3, window_bounds = array<i64: 2, 32, 256>}]} {
    %c0 = arith.constant 0 : index
    %c0_0 = arith.constant 0 : index
    %0 = vector.load %arg3[%c0, %c0_0] : memref<32x5xf32, #tpu.memory_space<vmem>>, vector<32x5xf32>
    %c0_1 = arith.constant 0 : index
    %c0_2 = arith.constant 0 : index
    %1 = vector.load %arg4[%c0_1, %c0_2] : memref<32x1xf32, #tpu.memory_space<vmem>>, vector<32x1xf32>
    %c0_3 = arith.constant 0 : index
    %c0_4 = arith.constant 0 : index
    %c0_5 = arith.constant 0 : index
    %2 = vector.load %arg2[%c0_3, %c0_4, %c0_5] : memref<2x5x256xf32, #tpu.memory_space<vmem>>, vector<1x5x256xf32>
    %3 = vector.shape_cast %2 : vector<1x5x256xf32> to vector<5x256xf32>
    %4 = vector.extract_strided_slice %0 {offsets = [0, 0], sizes = [32, 1], strides = [1, 1]} : vector<32x5xf32> to vector<32x1xf32>
    %5 = vector.extract_strided_slice %3 {offsets = [0, 0], sizes = [1, 256], strides = [1, 1]} : vector<5x256xf32> to vector<1x256xf32>
    %6 = vector.broadcast %4 : vector<32x1xf32> to vector<32x256xf32>
    %7 = vector.broadcast %5 : vector<1x256xf32> to vector<32x256xf32>
    %8 = arith.mulf %6, %7 : vector<32x256xf32>
    %9 = vector.broadcast %1 : vector<32x1xf32> to vector<32x256xf32>
    %10 = arith.addf %9, %8 : vector<32x256xf32>
    %11 = vector.extract_strided_slice %0 {offsets = [0, 1], sizes = [32, 1], strides = [1, 1]} : vector<32x5xf32> to vector<32x1xf32>
    %12 = vector.extract_strided_slice %3 {offsets = [1, 0], sizes = [1, 256], strides = [1, 1]} : vector<5x256xf32> to vector<1x256xf32>
    %13 = vector.broadcast %11 : vector<32x1xf32> to vector<32x256xf32>
    %14 = vector.broadcast %12 : vector<1x256xf32> to vector<32x256xf32>
    %15 = arith.mulf %13, %14 : vector<32x256xf32>
    %16 = arith.addf %10, %15 : vector<32x256xf32>
    %17 = vector.extract_strided_slice %0 {offsets = [0, 2], sizes = [32, 1], strides = [1, 1]} : vector<32x5xf32> to vector<32x1xf32>
    %18 = vector.extract_strided_slice %3 {offsets = [2, 0], sizes = [1, 256], strides = [1, 1]} : vector<5x256xf32> to vector<1x256xf32>
    %19 = vector.broadcast %17 : vector<32x1xf32> to vector<32x256xf32>
    %20 = vector.broadcast %18 : vector<1x256xf32> to vector<32x256xf32>
    %21 = arith.mulf %19, %20 : vector<32x256xf32>
    %22 = arith.addf %16, %21 : vector<32x256xf32>
    %23 = vector.extract_strided_slice %0 {offsets = [0, 3], sizes = [32, 1], strides = [1, 1]} : vector<32x5xf32> to vector<32x1xf32>
    %24 = vector.extract_strided_slice %3 {offsets = [3, 0], sizes = [1, 256], strides = [1, 1]} : vector<5x256xf32> to vector<1x256xf32>
    %25 = vector.broadcast %23 : vector<32x1xf32> to vector<32x256xf32>
    %26 = vector.broadcast %24 : vector<1x256xf32> to vector<32x256xf32>
    %27 = arith.mulf %25, %26 : vector<32x256xf32>
    %28 = arith.addf %22, %27 : vector<32x256xf32>
    %29 = vector.extract_strided_slice %0 {offsets = [0, 4], sizes = [32, 1], strides = [1, 1]} : vector<32x5xf32> to vector<32x1xf32>
    %30 = vector.extract_strided_slice %3 {offsets = [4, 0], sizes = [1, 256], strides = [1, 1]} : vector<5x256xf32> to vector<1x256xf32>
    %31 = vector.broadcast %29 : vector<32x1xf32> to vector<32x256xf32>
    %32 = vector.broadcast %30 : vector<1x256xf32> to vector<32x256xf32>
    %33 = arith.mulf %31, %32 : vector<32x256xf32>
    %34 = arith.addf %28, %33 : vector<32x256xf32>
    %c0_6 = arith.constant 0 : index
    %c0_7 = arith.constant 0 : index
    %c0_8 = arith.constant 0 : index
    %35 = vector.load %arg5[%c0_6, %c0_7, %c0_8] : memref<2x32x256xf32, #tpu.memory_space<vmem>>, vector<1x32x256xf32>
    %36 = vector.shape_cast %35 : vector<1x32x256xf32> to vector<32x256xf32>
    %37 = vector.shape_cast %34 : vector<32x256xf32> to vector<1x32x256xf32>
    tpu.vector_store %arg5[%c0_6, %c0_7, %c0_8], %37 {strides = array<i32>} : memref<2x32x256xf32, #tpu.memory_space<vmem>>, vector<1x32x256xf32>,
    %c1 = arith.constant 1 : index
    %c0_9 = arith.constant 0 : index
    %c0_10 = arith.constant 0 : index
    %38 = vector.load %arg2[%c1, %c0_9, %c0_10] : memref<2x5x256xf32, #tpu.memory_space<vmem>>, vector<1x5x256xf32>
    %39 = vector.shape_cast %38 : vector<1x5x256xf32> to vector<5x256xf32>
    %40 = vector.extract_strided_slice %0 {offsets = [0, 0], sizes = [32, 1], strides = [1, 1]} : vector<32x5xf32> to vector<32x1xf32>
    %41 = vector.extract_strided_slice %39 {offsets = [0, 0], sizes = [1, 256], strides = [1, 1]} : vector<5x256xf32> to vector<1x256xf32>
    %42 = vector.broadcast %40 : vector<32x1xf32> to vector<32x256xf32>
    %43 = vector.broadcast %41 : vector<1x256xf32> to vector<32x256xf32>
    %44 = arith.mulf %42, %43 : vector<32x256xf32>
    %45 = vector.broadcast %1 : vector<32x1xf32> to vector<32x256xf32>
    %46 = arith.addf %45, %44 : vector<32x256xf32>
    %47 = vector.extract_strided_slice %0 {offsets = [0, 1], sizes = [32, 1], strides = [1, 1]} : vector<32x5xf32> to vector<32x1xf32>
    %48 = vector.extract_strided_slice %39 {offsets = [1, 0], sizes = [1, 256], strides = [1, 1]} : vector<5x256xf32> to vector<1x256xf32>
    %49 = vector.broadcast %47 : vector<32x1xf32> to vector<32x256xf32>
    %50 = vector.broadcast %48 : vector<1x256xf32> to vector<32x256xf32>
    %51 = arith.mulf %49, %50 : vector<32x256xf32>
    %52 = arith.addf %46, %51 : vector<32x256xf32>
    %53 = vector.extract_strided_slice %0 {offsets = [0, 2], sizes = [32, 1], strides = [1, 1]} : vector<32x5xf32> to vector<32x1xf32>
    %54 = vector.extract_strided_slice %39 {offsets = [2, 0], sizes = [1, 256], strides = [1, 1]} : vector<5x256xf32> to vector<1x256xf32>
    %55 = vector.broadcast %53 : vector<32x1xf32> to vector<32x256xf32>
    %56 = vector.broadcast %54 : vector<1x256xf32> to vector<32x256xf32>
    %57 = arith.mulf %55, %56 : vector<32x256xf32>
    %58 = arith.addf %52, %57 : vector<32x256xf32>
    %59 = vector.extract_strided_slice %0 {offsets = [0, 3], sizes = [32, 1], strides = [1, 1]} : vector<32x5xf32> to vector<32x1xf32>
    %60 = vector.extract_strided_slice %39 {offsets = [3, 0], sizes = [1, 256], strides = [1, 1]} : vector<5x256xf32> to vector<1x256xf32>
    %61 = vector.broadcast %59 : vector<32x1xf32> to vector<32x256xf32>
    %62 = vector.broadcast %60 : vector<1x256xf32> to vector<32x256xf32>
    %63 = arith.mulf %61, %62 : vector<32x256xf32>
    %64 = arith.addf %58, %63 : vector<32x256xf32>
    %65 = vector.extract_strided_slice %0 {offsets = [0, 4], sizes = [32, 1], strides = [1, 1]} : vector<32x5xf32> to vector<32x1xf32>
    %66 = vector.extract_strided_slice %39 {offsets = [4, 0], sizes = [1, 256], strides = [1, 1]} : vector<5x256xf32> to vector<1x256xf32>
    %67 = vector.broadcast %65 : vector<32x1xf32> to vector<32x256xf32>
    %68 = vector.broadcast %66 : vector<1x256xf32> to vector<32x256xf32>
    %69 = arith.mulf %67, %68 : vector<32x256xf32>
    %70 = arith.addf %64, %69 : vector<32x256xf32>
    %c1_11 = arith.constant 1 : index
    %c0_12 = arith.constant 0 : index
    %c0_13 = arith.constant 0 : index
    %71 = vector.load %arg5[%c1_11, %c0_12, %c0_13] : memref<2x32x256xf32, #tpu.memory_space<vmem>>, vector<1x32x256xf32>
    %72 = vector.shape_cast %71 : vector<1x32x256xf32> to vector<32x256xf32>
    %73 = vector.shape_cast %70 : vector<32x256xf32> to vector<1x32x256xf32>
    tpu.vector_store %arg5[%c1_11, %c0_12, %c0_13], %73 {strides = array<i32>} : memref<2x32x256xf32, #tpu.memory_space<vmem>>, vector<1x32x256xf32>,
    return
  }
  func.func @transform_0(%arg0: i32, %arg1: i32) -> (i32, i32, i32) {
    %c0_i32 = arith.constant 0 : i32
    %c0_i32_0 = arith.constant 0 : i32
    return %arg0, %c0_i32, %arg1 : i32, i32, i32
  }
  func.func @transform_1(%arg0: i32, %arg1: i32) -> (i32, i32) {
    %c0_i32 = arith.constant 0 : i32
    %c0_i32_0 = arith.constant 0 : i32
    %c0_i32_1 = arith.constant 0 : i32
    return %c0_i32, %c0_i32_0 : i32, i32
  }
  func.func @transform_2(%arg0: i32, %arg1: i32) -> (i32, i32) {
    %c0_i32 = arith.constant 0 : i32
    %c0_i32_0 = arith.constant 0 : i32
    %c0_i32_1 = arith.constant 0 : i32
    return %c0_i32, %c0_i32_0 : i32, i32
  }
  func.func @transform_3(%arg0: i32, %arg1: i32) -> (i32, i32, i32) {
    %c0_i32 = arith.constant 0 : i32
    %c0_i32_0 = arith.constant 0 : i32
    return %arg0, %c0_i32, %arg1 : i32, i32, i32
  }
}

</mosaic_0001>

<llo_original>
// kernel: tpu_custom_call.1
$region0: #{tpu_custom_call.1}
  #allocation0 [shape = 'u32[]', space=smem, size = 0x4, offset = 0x4, fixed_abs, tag = 'smem constant byte address 0x4 - core index']
  #allocation1 [shape = 'u32[144,128]{1,0:T(1,128)}', space=vmem, size = 0x12000, scoped, tag = 'internal scratch']
  %s0 = inlined_call_operand.vmem [shape: f32[2,5,256], index: 0, kind: input, shape index: {}]
  %s1 = inlined_call_operand.vmem [shape: f32[32,5], index: 1, kind: input, shape index: {}]
  %s2 = inlined_call_operand.vmem [shape: f32[32,1], index: 2, kind: input, shape index: {}]
  %s3 = inlined_call_operand.hbm [shape: f32[2,32,256], index: 3, kind: output, shape index: {}]
  %s4 = sld [smem:[#allocation0]]
  $region22: #{tpu_custom_call.1} parent=0
    _
  %s6 = ssub.s32 1, %s4
  %s7 = scalar_select 0, %s6, %s4
  $region1: #{tpu_custom_call.1} parent=0
    #allocation2 [shape = 'u8[65536]{0}', space=vmem, size = 0x10000, scoped, tag = 'output window, operand 0, single buffered']
    #allocation3 [shape = 's32[1]{0}', space=sflag, size = 0x4, scoped, tag = 'scoped memory for tpu_custom_call.1']
    %8 = vsyncpa [#allocation3], 0
    // Predicated region
    $region2: #{tpu_custom_call.1} parent=1 // pred_check
      _
    $region3: #{tpu_custom_call.1} parent=1 // pred_check_branch
      %10 = sbr.rel (0) target = $region5
    $region4: #{tpu_custom_call.1} parent=1 // pred_region
      _
    $region5: #{tpu_custom_call.1} parent=1 // pred_fallthru
      _
    // Predicated region
    $region6: #{tpu_custom_call.1} parent=1 // pred_check
      _
    $region7: #{tpu_custom_call.1} parent=1 // pred_check_branch
      %12 = sbr.rel (0) target = $region9
    $region8: #{tpu_custom_call.1} parent=1 // pred_region
      _
    $region9: #{tpu_custom_call.1} parent=1 // pred_fallthru
      _
    // Predicated region
    $region10: #{tpu_custom_call.1} parent=1 // pred_check
      _
    $region11: #{tpu_custom_call.1} parent=1 // pred_check_branch
      %14 = sbr.rel (0) target = $region13
    $region12: #{tpu_custom_call.1} parent=1 // pred_region
      _
    $region13: #{tpu_custom_call.1} parent=1 // pred_fallthru
      _
    %v15 = vld [vmem:[%s1] sm:$0xff]
    %v16 = vld [vmem:[%s1 + $0x8] sm:$0xff]
    %v17 = vld [vmem:[%s1 + $0x10] sm:$0xff]
    %v18 = vld [vmem:[%s1 + $0x18] sm:$0xff]
    %v19 = vld [vmem:[%s2] sm:$0xff]
    %v20 = vld [vmem:[%s2 + $0x8] sm:$0xff]
    %v21 = vld [vmem:[%s2 + $0x10] sm:$0xff]
    %v22 = vld [vmem:[%s2 + $0x18] sm:$0xff]
    %v23 = vld [vmem:[%s0] sm:$0x1f]
    %v24 = vld [vmem:[%s0 + $0x8] sm:$0x1f]
    %26 = vset.pattern.permute.xlu0 0
    %27 = vperm.xlu0 %26, %v15
    %v28 = vpop.permute.xlu0 %27
    %31 = vset.pattern.permute.xlu0 0
    %32 = vperm.xlu0 %31, %v16
    %v33 = vpop.permute.xlu0 %32
    %36 = vset.pattern.permute.xlu0 0
    %37 = vperm.xlu0 %36, %v17
    %v38 = vpop.permute.xlu0 %37
    %41 = vset.pattern.permute.xlu0 0
    %42 = vperm.xlu0 %41, %v18
    %v43 = vpop.permute.xlu0 %42
    %v45 = vlaneseq
    %v46 = vshrl.u32 %v45, 7
    %v47 = vsub.s32 0, %v46
    %v48 = vrot.slane %v23, %v47
    %v49 = vlaneseq
    %v50 = vshrl.u32 %v49, 7
    %v51 = vsub.s32 0, %v50
    %v52 = vrot.slane %v24, %v51
    %v53 = vmul.f32 %v28, %v48
    %v54 = vmul.f32 %v28, %v52
    %v55 = vmul.f32 %v33, %v48
    %v56 = vmul.f32 %v33, %v52
    %v57 = vmul.f32 %v38, %v48
    %v58 = vmul.f32 %v38, %v52
    %v59 = vmul.f32 %v43, %v48
    %v60 = vmul.f32 %v43, %v52
    %62 = vset.pattern.permute.xlu0 0
    %63 = vperm.xlu0 %62, %v19
    %v64 = vpop.permute.xlu0 %63
    %67 = vset.pattern.permute.xlu0 0
    %68 = vperm.xlu0 %67, %v20
    %v69 = vpop.permute.xlu0 %68
    %72 = vset.pattern.permute.xlu0 0
    %73 = vperm.xlu0 %72, %v21
    %v74 = vpop.permute.xlu0 %73
    %77 = vset.pattern.permute.xlu0 0
    %78 = vperm.xlu0 %77, %v22
    %v79 = vpop.permute.xlu0 %78
    %v81 = vadd.f32 %v64, %v53
    %v82 = vadd.f32 %v64, %v54
    %v83 = vadd.f32 %v69, %v55
    %v84 = vadd.f32 %v69, %v56
    %v85 = vadd.f32 %v74, %v57
    %v86 = vadd.f32 %v74, %v58
    %v87 = vadd.f32 %v79, %v59
    %v88 = vadd.f32 %v79, %v60
    %89 = vset.pattern.permute.xlu0 1
    %90 = vperm.xlu0 %89, %v15
    %v91 = vpop.permute.xlu0 %90
    %93 = vset.pattern.permute.xlu0 1
    %94 = vperm.xlu0 %93, %v16
    %v95 = vpop.permute.xlu0 %94
    %97 = vset.pattern.permute.xlu0 1
    %98 = vperm.xlu0 %97, %v17
    %v99 = vpop.permute.xlu0 %98
    %101 = vset.pattern.permute.xlu0 1
    %102 = vperm.xlu0 %101, %v18
    %v103 = vpop.permute.xlu0 %102
    %v105 = vlaneseq
    %v106 = vshrl.u32 %v105, 7
    %v107 = vsub.s32 1, %v106
    %v108 = vrot.slane %v23, %v107
    %v109 = vlaneseq
    %v110 = vshrl.u32 %v109, 7
    %v111 = vsub.s32 1, %v110
    %v112 = vrot.slane %v24, %v111
    %v113 = vmul.f32 %v91, %v108
    %v114 = vmul.f32 %v91, %v112
    %v115 = vmul.f32 %v95, %v108
    %v116 = vmul.f32 %v95, %v112
    %v117 = vmul.f32 %v99, %v108
    %v118 = vmul.f32 %v99, %v112
    %v119 = vmul.f32 %v103, %v108
    %v120 = vmul.f32 %v103, %v112
    %v121 = vadd.f32 %v81, %v113
    %v122 = vadd.f32 %v82, %v114
    %v123 = vadd.f32 %v83, %v115
    %v124 = vadd.f32 %v84, %v116
    %v125 = vadd.f32 %v85, %v117
    %v126 = vadd.f32 %v86, %v118
    %v127 = vadd.f32 %v87, %v119
    %v128 = vadd.f32 %v88, %v120
    %129 = vset.pattern.permute.xlu0 2
    %130 = vperm.xlu0 %129, %v15
    %v131 = vpop.permute.xlu0 %130
    %133 = vset.pattern.permute.xlu0 2
    %134 = vperm.xlu0 %133, %v16
    %v135 = vpop.permute.xlu0 %134
    %137 = vset.pattern.permute.xlu0 2
    %138 = vperm.xlu0 %137, %v17
    %v139 = vpop.permute.xlu0 %138
    %141 = vset.pattern.permute.xlu0 2
    %142 = vperm.xlu0 %141, %v18
    %v143 = vpop.permute.xlu0 %142
    %v145 = vlaneseq
    %v146 = vshrl.u32 %v145, 7
    %v147 = vsub.s32 2, %v146
    %v148 = vrot.slane %v23, %v147
    %v149 = vlaneseq
    %v150 = vshrl.u32 %v149, 7
    %v151 = vsub.s32 2, %v150
    %v152 = vrot.slane %v24, %v151
    %v153 = vmul.f32 %v131, %v148
    %v154 = vmul.f32 %v131, %v152
    %v155 = vmul.f32 %v135, %v148
    %v156 = vmul.f32 %v135, %v152
    %v157 = vmul.f32 %v139, %v148
    %v158 = vmul.f32 %v139, %v152
    %v159 = vmul.f32 %v143, %v148
    %v160 = vmul.f32 %v143, %v152
    %v161 = vadd.f32 %v121, %v153
    %v162 = vadd.f32 %v122, %v154
    %v163 = vadd.f32 %v123, %v155
    %v164 = vadd.f32 %v124, %v156
    %v165 = vadd.f32 %v125, %v157
    %v166 = vadd.f32 %v126, %v158
    %v167 = vadd.f32 %v127, %v159
    %v168 = vadd.f32 %v128, %v160
    %169 = vset.pattern.permute.xlu0 3
    %170 = vperm.xlu0 %169, %v15
    %v171 = vpop.permute.xlu0 %170
    %173 = vset.pattern.permute.xlu0 3
    %174 = vperm.xlu0 %173, %v16
    %v175 = vpop.permute.xlu0 %174
    %177 = vset.pattern.permute.xlu0 3
    %178 = vperm.xlu0 %177, %v17
    %v179 = vpop.permute.xlu0 %178
    %181 = vset.pattern.permute.xlu0 3
    %182 = vperm.xlu0 %181, %v18
    %v183 = vpop.permute.xlu0 %182
    %v185 = vlaneseq
    %v186 = vshrl.u32 %v185, 7
    %v187 = vsub.s32 3, %v186
    %v188 = vrot.slane %v23, %v187
    %v189 = vlaneseq
    %v190 = vshrl.u32 %v189, 7
    %v191 = vsub.s32 3, %v190
    %v192 = vrot.slane %v24, %v191
    %v193 = vmul.f32 %v171, %v188
    %v194 = vmul.f32 %v171, %v192
    %v195 = vmul.f32 %v175, %v188
    %v196 = vmul.f32 %v175, %v192
    %v197 = vmul.f32 %v179, %v188
    %v198 = vmul.f32 %v179, %v192
    %v199 = vmul.f32 %v183, %v188
    %v200 = vmul.f32 %v183, %v192
    %v201 = vadd.f32 %v161, %v193
    %v202 = vadd.f32 %v162, %v194
    %v203 = vadd.f32 %v163, %v195
    %v204 = vadd.f32 %v164, %v196
    %v205 = vadd.f32 %v165, %v197
    %v206 = vadd.f32 %v166, %v198
    %v207 = vadd.f32 %v167, %v199
    %v208 = vadd.f32 %v168, %v200
    %209 = vset.pattern.permute.xlu0 4
    %210 = vperm.xlu0 %209, %v15
    %v211 = vpop.permute.xlu0 %210
    %213 = vset.pattern.permute.xlu0 4
    %214 = vperm.xlu0 %213, %v16
    %v215 = vpop.permute.xlu0 %214
    %217 = vset.pattern.permute.xlu0 4
    %218 = vperm.xlu0 %217, %v17
    %v219 = vpop.permute.xlu0 %218
    %221 = vset.pattern.permute.xlu0 4
    %222 = vperm.xlu0 %221, %v18
    %v223 = vpop.permute.xlu0 %222
    %v225 = vlaneseq
    %v226 = vshrl.u32 %v225, 7
    %v227 = vsub.s32 4, %v226
    %v228 = vrot.slane %v23, %v227
    %v229 = vlaneseq
    %v230 = vshrl.u32 %v229, 7
    %v231 = vsub.s32 4, %v230
    %v232 = vrot.slane %v24, %v231
    %v233 = vmul.f32 %v211, %v228
    %v234 = vmul.f32 %v211, %v232
    %v235 = vmul.f32 %v215, %v228
    %v236 = vmul.f32 %v215, %v232
    %v237 = vmul.f32 %v219, %v228
    %v238 = vmul.f32 %v219, %v232
    %v239 = vmul.f32 %v223, %v228
    %v240 = vmul.f32 %v223, %v232
    %v241 = vadd.f32 %v201, %v233
    %v242 = vadd.f32 %v202, %v234
    %v243 = vadd.f32 %v203, %v235
    %v244 = vadd.f32 %v204, %v236
    %v245 = vadd.f32 %v205, %v237
    %v246 = vadd.f32 %v206, %v238
    %v247 = vadd.f32 %v207, %v239
    %v248 = vadd.f32 %v208, %v240
    %249 = vst [vmem:[#allocation2] sm:$0xff] %v241
    %250 = vst [vmem:[#allocation2 + $0x8] sm:$0xff] %v242
    %251 = vst [vmem:[#allocation2 + $0x10] sm:$0xff] %v243
    %252 = vst [vmem:[#allocation2 + $0x18] sm:$0xff] %v244
    %253 = vst [vmem:[#allocation2 + $0x20] sm:$0xff] %v245
    %254 = vst [vmem:[#allocation2 + $0x28] sm:$0xff] %v246
    %255 = vst [vmem:[#allocation2 + $0x30] sm:$0xff] %v247
    %256 = vst [vmem:[#allocation2 + $0x38] sm:$0xff] %v248
    %s257 = scalar_lea.vmem %s0, 16
    %v258 = vld [vmem:[%s257] sm:$0x1f]
    %v259 = vld [vmem:[%s257 + $0x8] sm:$0x1f]
    %v260 = vlaneseq
    %v261 = vshrl.u32 %v260, 7
    %v262 = vsub.s32 0, %v261
    %v263 = vrot.slane %v258, %v262
    %v264 = vlaneseq
    %v265 = vshrl.u32 %v264, 7
    %v266 = vsub.s32 0, %v265
    %v267 = vrot.slane %v259, %v266
    %v268 = vmul.f32 %v28, %v263
    %v269 = vmul.f32 %v28, %v267
    %v270 = vmul.f32 %v33, %v263
    %v271 = vmul.f32 %v33, %v267
    %v272 = vmul.f32 %v38, %v263
    %v273 = vmul.f32 %v38, %v267
    %v274 = vmul.f32 %v43, %v263
    %v275 = vmul.f32 %v43, %v267
    %v276 = vadd.f32 %v64, %v268
    %v277 = vadd.f32 %v64, %v269
    %v278 = vadd.f32 %v69, %v270
    %v279 = vadd.f32 %v69, %v271
    %v280 = vadd.f32 %v74, %v272
    %v281 = vadd.f32 %v74, %v273
    %v282 = vadd.f32 %v79, %v274
    %v283 = vadd.f32 %v79, %v275
    %v284 = vlaneseq
    %v285 = vshrl.u32 %v284, 7
    %v286 = vsub.s32 1, %v285
    %v287 = vrot.slane %v258, %v286
    %v288 = vlaneseq
    %v289 = vshrl.u32 %v288, 7
    %v290 = vsub.s32 1, %v289
    %v291 = vrot.slane %v259, %v290
    %v292 = vmul.f32 %v91, %v287
    %v293 = vmul.f32 %v91, %v291
    %v294 = vmul.f32 %v95, %v287
    %v295 = vmul.f32 %v95, %v291
    %v296 = vmul.f32 %v99, %v287
    %v297 = vmul.f32 %v99, %v291
    %v298 = vmul.f32 %v103, %v287
    %v299 = vmul.f32 %v103, %v291
    %v300 = vadd.f32 %v276, %v292
    %v301 = vadd.f32 %v277, %v293
    %v302 = vadd.f32 %v278, %v294
    %v303 = vadd.f32 %v279, %v295
    %v304 = vadd.f32 %v280, %v296
    %v305 = vadd.f32 %v281, %v297
    %v306 = vadd.f32 %v282, %v298
    %v307 = vadd.f32 %v283, %v299
    %v308 = vlaneseq
    %v309 = vshrl.u32 %v308, 7
    %v310 = vsub.s32 2, %v309
    %v311 = vrot.slane %v258, %v310
    %v312 = vlaneseq
    %v313 = vshrl.u32 %v312, 7
    %v314 = vsub.s32 2, %v313
    %v315 = vrot.slane %v259, %v314
    %v316 = vmul.f32 %v131, %v311
    %v317 = vmul.f32 %v131, %v315
    %v318 = vmul.f32 %v135, %v311
    %v319 = vmul.f32 %v135, %v315
    %v320 = vmul.f32 %v139, %v311
    %v321 = vmul.f32 %v139, %v315
    %v322 = vmul.f32 %v143, %v311
    %v323 = vmul.f32 %v143, %v315
    %v324 = vadd.f32 %v300, %v316
    %v325 = vadd.f32 %v301, %v317
    %v326 = vadd.f32 %v302, %v318
    %v327 = vadd.f32 %v303, %v319
    %v328 = vadd.f32 %v304, %v320
    %v329 = vadd.f32 %v305, %v321
    %v330 = vadd.f32 %v306, %v322
    %v331 = vadd.f32 %v307, %v323
    %v332 = vlaneseq
    %v333 = vshrl.u32 %v332, 7
    %v334 = vsub.s32 3, %v333
    %v335 = vrot.slane %v258, %v334
    %v336 = vlaneseq
    %v337 = vshrl.u32 %v336, 7
    %v338 = vsub.s32 3, %v337
    %v339 = vrot.slane %v259, %v338
    %v340 = vmul.f32 %v171, %v335
    %v341 = vmul.f32 %v171, %v339
    %v342 = vmul.f32 %v175, %v335
    %v343 = vmul.f32 %v175, %v339
    %v344 = vmul.f32 %v179, %v335
    %v345 = vmul.f32 %v179, %v339
    %v346 = vmul.f32 %v183, %v335
    %v347 = vmul.f32 %v183, %v339
    %v348 = vadd.f32 %v324, %v340
    %v349 = vadd.f32 %v325, %v341
    %v350 = vadd.f32 %v326, %v342
    %v351 = vadd.f32 %v327, %v343
    %v352 = vadd.f32 %v328, %v344
    %v353 = vadd.f32 %v329, %v345
    %v354 = vadd.f32 %v330, %v346
    %v355 = vadd.f32 %v331, %v347
    %v356 = vlaneseq
    %v357 = vshrl.u32 %v356, 7
    %v358 = vsub.s32 4, %v357
    %v359 = vrot.slane %v258, %v358
    %v360 = vlaneseq
    %v361 = vshrl.u32 %v360, 7
    %v362 = vsub.s32 4, %v361
    %v363 = vrot.slane %v259, %v362
    %v364 = vmul.f32 %v211, %v359
    %v365 = vmul.f32 %v211, %v363
    %v366 = vmul.f32 %v215, %v359
    %v367 = vmul.f32 %v215, %v363
    %v368 = vmul.f32 %v219, %v359
    %v369 = vmul.f32 %v219, %v363
    %v370 = vmul.f32 %v223, %v359
    %v371 = vmul.f32 %v223, %v363
    %v372 = vadd.f32 %v348, %v364
    %v373 = vadd.f32 %v349, %v365
    %v374 = vadd.f32 %v350, %v366
    %v375 = vadd.f32 %v351, %v367
    %v376 = vadd.f32 %v352, %v368
    %v377 = vadd.f32 %v353, %v369
    %v378 = vadd.f32 %v354, %v370
    %v379 = vadd.f32 %v355, %v371
    %s380 = scalar_lea.vmem [#allocation2], 64
    %381 = vst [vmem:[%s380] sm:$0xff] %v372
    %382 = vst [vmem:[%s380 + $0x8] sm:$0xff] %v373
    %383 = vst [vmem:[%s380 + $0x10] sm:$0xff] %v374
    %384 = vst [vmem:[%s380 + $0x18] sm:$0xff] %v375
    %385 = vst [vmem:[%s380 + $0x20] sm:$0xff] %v376
    %386 = vst [vmem:[%s380 + $0x28] sm:$0xff] %v377
    %387 = vst [vmem:[%s380 + $0x30] sm:$0xff] %v378
    %388 = vst [vmem:[%s380 + $0x38] sm:$0xff] %v379
    // Predicated region
    $region14: #{tpu_custom_call.1} parent=1 // pred_check
      _
    $region15: #{tpu_custom_call.1} parent=1 // pred_check_branch
      %390 = sbr.rel (0) target = $region17
    $region16: #{tpu_custom_call.1} parent=1 // pred_region
      %s392 = ssub.s32 2048, 2048
      %393 = vsyncadd [#allocation3], %s392
      %s394 = sshll.u32 [#allocation2], 4
      %s395 = int_to_ptr.vmem [resolvable:$true] %s394
      %400 = dma.vmem_to_hbm [thread:$0]  %s395, 2048, %s3, [#allocation3], 256, 256, 16
    $region17: #{tpu_custom_call.1} parent=1 // pred_fallthru
      _
    // Predicated region
    $region18: #{tpu_custom_call.1} parent=1 // pred_check
      _
    $region19: #{tpu_custom_call.1} parent=1 // pred_check_branch
      %402 = sbr.rel (0) target = $region21
    $region20: #{tpu_custom_call.1} parent=1 // pred_region
      %403 = dma.done [#allocation3], 2048
    $region21: #{tpu_custom_call.1} parent=1 // pred_fallthru
      _
    %404 = vsyncpa [#allocation3], 1

</llo_original>
